<compile_context>
chip_gen: v7x
topology: tpu7x:2x2x1
jax: 0.10.0
libtpu: 0.0.40
codegen_flags: <defaults>
</compile_context>

<pallas_src>
import math

import jax
import jax.numpy as jnp
from jax import lax
from jax.experimental import pallas as pl
from jax.experimental.pallas import tpu as pltpu

LANES = 128      # lane width of one f32 vreg tile
SUBLANES = 8     # sublane height of one f32 vreg tile


# -----------------------------------------------------------------------------
# Parameter slab layout: every block starts at an 8-row-aligned offset, lane 0.
# -----------------------------------------------------------------------------
def _slab_layout(dims, B):
    C, d1, d2, S, d4, d5 = dims
    half = C // 2
    off = {}
    row = 0

    def take(name, nrows):
        nonlocal row
        off[name] = row
        row += -(-nrows // SUBLANES) * SUBLANES     # round up to 8 rows

    take("conv_even", C)       # (C, half)  conv weight^T, even output channels
    take("conv_odd", C)        # (C, half)  conv weight^T, odd  output channels
    take("bc_even", 1)         # (1, half)
    take("bc_odd", 1)          # (1, half)
    take("w1T", half)          # (half, d2) tolow Linear #1 weight^T
    take("b1", 1)              # (1, d2)
    take("w2col", d2)          # (d2, 1)    tolow Linear #2 weight as column
    take("fc1T_tiled", B * S)  # (B*S, d4)  fc1 weight^T tiled B times
    take("sel", B)             # (B, B*S)   per-example block row-sum selector
    take("bias_u", 1)          # (1, d4)    fc1_b + b2 * colsum(fc1^T)
    take("g1", 1)              # (1, d4)
    take("be1", 1)             # (1, d4)
    take("fc2T", d4)           # (d4, d5)
    take("fc2b", 1)            # (1, d5)
    take("g2", 1)              # (1, d5)
    take("be2", 1)             # (1, d5)
    take("fc3row", 1)          # (1, d5)    fc3 weight as a row
    return off, row


def pack_params(dims, B, params):
    """Pack all parameters into one tile-aligned (rows, 128) f32 slab + scalars.

    Done once on the host; the per-call path only DMAs the slab (once) and a
    single SMEM scalar.
    """
    C, d1, d2, S, d4, d5 = dims
    (conv_w, conv_b, w1, b1, w2, b2,
     fc1_w, fc1_b, g1, be1,
     fc2_w, fc2_b, g2, be2,
     fc3_w, fc3_b) = params

    off, nrows = _slab_layout(dims, B)
    fc1T = fc1_w.T                                           # (S, d4)

    blocks = {
        # max_pool1d(k=2) over channels folded into the conv: even/odd halves.
        "conv_even": conv_w[0::2, :].T,                      # (C, half)
        "conv_odd":  conv_w[1::2, :].T,                      # (C, half)
        "bc_even":   conv_b[0::2][None, :],                  # (1, half)
        "bc_odd":    conv_b[1::2][None, :],                  # (1, half)
        "w1T":       w1.T,                                   # (half, d2)
        "b1":        b1[None, :],                            # (1, d2)
        "w2col":     w2.T,                                   # (d2, 1)
        # tolow-Linear#2 + fc1 fusion operands (exact algebraic fold):
        "fc1T_tiled": jnp.tile(fc1T, (B, 1)),                # (B*S, d4)
        "sel":       jnp.repeat(jnp.eye(B, dtype=jnp.float32), S, axis=1),  # (B, B*S)
        "bias_u":    (b2[0] * jnp.sum(fc1T, axis=0) + fc1_b)[None, :],      # (1, d4)
        "g1": g1[None, :], "be1": be1[None, :],
        "fc2T": fc2_w.T,                                     # (d4, d5)
        "fc2b": fc2_b[None, :], "g2": g2[None, :], "be2": be2[None, :],
        "fc3row": fc3_w,                                     # (1, d5)
    }

    slab = jnp.zeros((nrows, LANES), jnp.float32)
    for name, blk in blocks.items():
        r = off[name]
        slab = slab.at[r:r + blk.shape[0], :blk.shape[1]].set(
            blk.astype(jnp.float32))
    scalars = fc3_b.astype(jnp.float32).reshape(1)           # (1,) -> SMEM
    return slab, scalars


# -----------------------------------------------------------------------------
# Kernel factory: one grid step = one independent (B, S, C) example.
# -----------------------------------------------------------------------------
def make_net_forward(dims, B, N):
    C, d1, d2, S, d4, d5 = dims
    half = C // 2
    BS = B * S
    off, nrows = _slab_layout(dims, B)
    f32 = jnp.float32

    def leaky(t):
        # LeakyReLU, PyTorch default negative_slope = 0.01 (f32 VPU path).
        return jnp.maximum(t, 0.01 * t)

    def batchnorm(v, gamma, beta):
        # training-mode BatchNorm1d: batch stats over the B-row example group,
        # biased variance, eps=1e-5 (tiny cross-sublane reduce; XLU is idle).
        m = jnp.mean(v, axis=0, keepdims=True)
        c = v - m
        var = jnp.mean(c * c, axis=0, keepdims=True)
        return c * lax.rsqrt(var + 1e-5) * gamma + beta

    def kernel(x_ref, p_ref, s_ref, out_ref):
        x = x_ref[...]                                       # (B*S, C)

        def blk(name, r, c):
            o = off[name]                                    # 8-row aligned, lane 0
            return p_ref[o:o + r, 0:c]

        # -------- encoder: conv(k=1) + LeakyReLU + channel-pair max-pool ----
        # Even/odd conv halves -> max of the two results (LeakyReLU monotone),
        # no lane-offset slice / rotate.
        a_e = jnp.dot(x, blk("conv_even", C, half),
                      preferred_element_type=f32) + blk("bc_even", 1, half)
        a_o = jnp.dot(x, blk("conv_odd", C, half),
                      preferred_element_type=f32) + blk("bc_odd", 1, half)
        z = leaky(jnp.maximum(a_e, a_o))                     # (B*S, half)

        # -------- tolow Linear#1 + LeakyReLU --------
        h = leaky(jnp.dot(z, blk("w1T", half, d2),
                          preferred_element_type=f32) + blk("b1", 1, d2))  # (B*S, d2)

        # -------- tolow Linear#2 fused with fc1 (no B-loop, no reshape) -----
        # t_raw[r]   = h[r,:] . w2                    (one MXU push)
        # u_lin[b,:] = sum_s (t_raw[bS+s]+b2)*fc1T[s,:] + fc1_b
        #            = sel @ (t_raw * fc1T_tiled) + bias_u   (one MXU push)
        t_raw = jnp.dot(h, blk("w2col", d2, 1),
                        preferred_element_type=f32)          # (B*S, 1)
        m_mat = t_raw * blk("fc1T_tiled", BS, d4)            # (B*S, d4) lane bcast
        u_lin = jnp.dot(blk("sel", B, BS), m_mat,
                        preferred_element_type=f32) + blk("bias_u", 1, d4)  # (B, d4)
        u = batchnorm(leaky(u_lin), blk("g1", 1, d4), blk("be1", 1, d4))

        # -------- fc2 + LeakyReLU + BN2 --------
        v_lin = jnp.dot(u, blk("fc2T", d4, d5),
                        preferred_element_type=f32) + blk("fc2b", 1, d5)
        v = batchnorm(leaky(v_lin), blk("g2", 1, d5), blk("be2", 1, d5))

        # TODO(synk): dropout(p=0.3, training=True) skipped (identity).

        # -------- fc3, emitted lane-dense as a (1, B) row --------
        out_row = lax.dot_general(blk("fc3row", 1, d5), v,
                                  (((1,), (1,)), ((), ())),
                                  preferred_element_type=f32) + s_ref[0]   # (1, B)
        out_ref[...] = out_row

    call = pl.pallas_call(
        kernel,
        out_shape=jax.ShapeDtypeStruct((N, 1, B), jnp.float32),
        grid=(N,),
        in_specs=[
            # one example per grid step; block == full dims on the last 2 axes
            pl.BlockSpec((None, BS, C), lambda n: (n, 0, 0)),
            # tile-aligned parameter slab, DMA'd once (constant block index)
            pl.BlockSpec((nrows, LANES), lambda n: (0, 0)),
            # fc3 bias as a true scalar in SMEM
            pl.BlockSpec(memory_space=pltpu.MemorySpace.SMEM),
        ],
        out_specs=pl.BlockSpec((None, 1, B), lambda n: (n, 0, 0)),
        compiler_params=pltpu.CompilerParams(
            dimension_semantics=("parallel",)),   # shards examples across TCs on v7x
    )

    @jax.jit
    def forward(x, packed, scalars):
        # x: (N, B, S, C) — N independent examples of the original (B, S, C) net.
        xf = x.reshape(N, BS, C).astype(jnp.float32)   # free reshape, no transpose
        out = call(xf, packed, scalars)                # (N, 1, B)
        return out.reshape(N, B, 1)                    # per-example (B, 1) outputs

    return forward


# -----------------------------------------------------------------------------
# Deterministic parameter init (PyTorch-style U(-1/sqrt(fan_in), 1/sqrt(fan_in)))
# -----------------------------------------------------------------------------
def init_params(dims, key):
    def lin(k, fan_in, w_shape, b_shape):
        bound = 1.0 / math.sqrt(fan_in)
        kw, kb = jax.random.split(k)
        w = jax.random.uniform(kw, w_shape, jnp.float32, -bound, bound)
        b = jax.random.uniform(kb, b_shape, jnp.float32, -bound, bound)
        return w, b

    C, d1, d2, d3, d4, d5 = dims
    ks = jax.random.split(key, 6)

    conv_w, conv_b = lin(ks[0], C, (C, C), (C,))        # Conv1d(C,C,1) squeezed
    w1, b1 = lin(ks[1], d1, (d2, d1), (d2,))            # tolow Linear(d1,d2)
    w2, b2 = lin(ks[2], d2, (1, d2), (1,))              # tolow Linear(d2,1)
    fc1_w, fc1_b = lin(ks[3], d3, (d4, d3), (d4,))      # fc1
    fc2_w, fc2_b = lin(ks[4], d4, (d5, d4), (d5,))      # fc2
    fc3_w, fc3_b = lin(ks[5], d5, (1, d5), (1,))        # fc3

    g1 = jnp.ones((d4,), jnp.float32); be1 = jnp.zeros((d4,), jnp.float32)
    g2 = jnp.ones((d5,), jnp.float32); be2 = jnp.zeros((d5,), jnp.float32)

    return (conv_w, conv_b, w1, b1, w2, b2,
            fc1_w, fc1_b, g1, be1,
            fc2_w, fc2_b, g2, be2,
            fc3_w, fc3_b)


# -----------------------------------------------------------------------------
# Pure-JAX reference (mirrors the PyTorch module, per (B, S, C) example)
# -----------------------------------------------------------------------------
def net_reference(x, params):
    (conv_w, conv_b, w1, b1, w2, b2,
     fc1_w, fc1_b, g1, be1,
     fc2_w, fc2_b, g2, be2,
     fc3_w, fc3_b) = params
    leaky = lambda t: jnp.maximum(t, 0.01 * t)
    B, S, C = x.shape

    v = jnp.einsum("oc,bsc->bso", conv_w, x) + conv_b[None, None, :]
    v = leaky(v)                                                  # (B, S, C)
    v = jnp.max(v.reshape(B, S, C // 2, 2), axis=-1)              # maxpool pairs
    h = leaky(jnp.einsum("oc,bsc->bso", w1, v) + b1[None, None, :])
    t = (jnp.einsum("oc,bsc->bso", w2, h) + b2[None, None, :]).reshape(B, S)

    def bn(u, g, be):
        m = jnp.mean(u, axis=0, keepdims=True)
        var = jnp.mean((u - m) ** 2, axis=0, keepdims=True)
        return (u - m) / jnp.sqrt(var + 1e-5) * g + be

    u = bn(leaky(t @ fc1_w.T + fc1_b), g1, be1)
    w = bn(leaky(u @ fc2_w.T + fc2_b), g2, be2)
    return w @ fc3_w.T + fc3_b


if __name__ == "__main__":
    # dims = [C, C//2, d2, S, d4, d5] ; each example is (B, S, C) like the module
    dims = (8, 4, 8, 16, 32, 16)
    B, S, C = 2, dims[3], dims[0]
    N = 8                      # independent examples batched over the grid axis

    key = jax.random.PRNGKey(0)
    kx, kp = jax.random.split(key)
    x = jax.random.normal(kx, (N, B, S, C), jnp.float32)

    params = init_params(dims, kp)
    packed, scalars = pack_params(dims, B, params)   # one-time host-side packing
    forward = make_net_forward(dims, B, N)

    out = jax.block_until_ready(forward(x, packed, scalars))    # (N, B, 1)

    ref = jax.vmap(lambda xe: net_reference(xe, params))(x)     # (N, B, 1)
    assert out.shape == (N, B, 1)
    assert jnp.allclose(out, ref, atol=1e-4, rtol=1e-4), (out, ref)

    print("KERNEL_OK")
</pallas_src>

<mosaic_0001>
module attributes {stable_mosaic.version = 11 : i64} {
  func.func @kernel(%arg0: i32, %arg1: memref<1x32x8xf32, #tpu.memory_space<vmem>>, %arg2: memref<184x128xf32, #tpu.memory_space<vmem>>, %arg3: memref<1xf32, #tpu.memory_space<smem>>, %arg4: memref<1x1x2xf32, #tpu.memory_space<vmem>>) attributes {dimension_semantics = [#tpu.dimension_semantics<parallel>], iteration_bounds = array<i64: 8>, scalar_prefetch = 0 : i64, scratch_operands = 0 : i64, tpu.core_type = #tpu.core_type<tc>, window_params = [{transform_indices = @transform_0, window_bounds = array<i64: 1, 32, 8>}, {pipeline_mode = #tpu.pipeline_mode<synchronous>, transform_indices = @transform_1, window_bounds = array<i64: 184, 128>}, {transform_indices = @transform_2, window_bounds = array<i64: 1>}, {transform_indices = @transform_3, window_bounds = array<i64: 1, 1, 2>}]} {
    %c0 = arith.constant 0 : index
    %c0_0 = arith.constant 0 : index
    %c0_1 = arith.constant 0 : index
    %0 = vector.load %arg1[%c0, %c0_0, %c0_1] : memref<1x32x8xf32, #tpu.memory_space<vmem>>, vector<1x32x8xf32>
    %1 = vector.shape_cast %0 : vector<1x32x8xf32> to vector<32x8xf32>
    %c0_2 = arith.constant 0 : index
    %c0_3 = arith.constant 0 : index
    %2 = vector.load %arg2[%c0_2, %c0_3] : memref<184x128xf32, #tpu.memory_space<vmem>>, vector<8x4xf32>
    %cst = arith.constant dense<0.000000e+00> : vector<32x4xf32>
    %3 = tpu.matmul %1, %2, %cst {dimension_numbers = #tpu.dot_dimension_numbers<[1], [0], [0], [1], [0, 0, 1, 1], [], []>} : vector<32x8xf32>, vector<8x4xf32>, vector<32x4xf32> -> vector<32x4xf32>
    %c16 = arith.constant 16 : index
    %c0_4 = arith.constant 0 : index
    %4 = vector.load %arg2[%c16, %c0_4] : memref<184x128xf32, #tpu.memory_space<vmem>>, vector<1x4xf32>
    %5 = vector.broadcast %4 : vector<1x4xf32> to vector<32x4xf32>
    %6 = arith.addf %3, %5 : vector<32x4xf32>
    %c8 = arith.constant 8 : index
    %c0_5 = arith.constant 0 : index
    %7 = vector.load %arg2[%c8, %c0_5] : memref<184x128xf32, #tpu.memory_space<vmem>>, vector<8x4xf32>
    %cst_6 = arith.constant dense<0.000000e+00> : vector<32x4xf32>
    %8 = tpu.matmul %1, %7, %cst_6 {dimension_numbers = #tpu.dot_dimension_numbers<[1], [0], [0], [1], [0, 0, 1, 1], [], []>} : vector<32x8xf32>, vector<8x4xf32>, vector<32x4xf32> -> vector<32x4xf32>
    %c24 = arith.constant 24 : index
    %c0_7 = arith.constant 0 : index
    %9 = vector.load %arg2[%c24, %c0_7] : memref<184x128xf32, #tpu.memory_space<vmem>>, vector<1x4xf32>
    %10 = vector.broadcast %9 : vector<1x4xf32> to vector<32x4xf32>
    %11 = arith.addf %8, %10 : vector<32x4xf32>
    %12 = arith.maximumf %6, %11 : vector<32x4xf32>
    %cst_8 = arith.constant 0.00999999977 : f32
    %13 = vector.broadcast %cst_8 : f32 to vector<32x4xf32>
    %14 = arith.mulf %13, %12 : vector<32x4xf32>
    %15 = arith.maximumf %12, %14 : vector<32x4xf32>
    %c32 = arith.constant 32 : index
    %c0_9 = arith.constant 0 : index
    %16 = vector.load %arg2[%c32, %c0_9] : memref<184x128xf32, #tpu.memory_space<vmem>>, vector<4x8xf32>
    %cst_10 = arith.constant dense<0.000000e+00> : vector<32x8xf32>
    %17 = tpu.matmul %15, %16, %cst_10 {dimension_numbers = #tpu.dot_dimension_numbers<[1], [0], [0], [1], [0, 0, 1, 1], [], []>} : vector<32x4xf32>, vector<4x8xf32>, vector<32x8xf32> -> vector<32x8xf32>
    %c40 = arith.constant 40 : index
    %c0_11 = arith.constant 0 : index
    %18 = vector.load %arg2[%c40, %c0_11] : memref<184x128xf32, #tpu.memory_space<vmem>>, vector<1x8xf32>
    %19 = vector.broadcast %18 : vector<1x8xf32> to vector<32x8xf32>
    %20 = arith.addf %17, %19 : vector<32x8xf32>
    %cst_12 = arith.constant 0.00999999977 : f32
    %21 = vector.broadcast %cst_12 : f32 to vector<32x8xf32>
    %22 = arith.mulf %21, %20 : vector<32x8xf32>
    %23 = arith.maximumf %20, %22 : vector<32x8xf32>
    %c48 = arith.constant 48 : index
    %c0_13 = arith.constant 0 : index
    %24 = vector.load %arg2[%c48, %c0_13] : memref<184x128xf32, #tpu.memory_space<vmem>>, vector<8x1xf32>
    %cst_14 = arith.constant dense<0.000000e+00> : vector<32x1xf32>
    %25 = tpu.matmul %23, %24, %cst_14 {dimension_numbers = #tpu.dot_dimension_numbers<[1], [0], [0], [1], [0, 0, 1, 1], [], []>} : vector<32x8xf32>, vector<8x1xf32>, vector<32x1xf32> -> vector<32x1xf32>
    %c56 = arith.constant 56 : index
    %c0_15 = arith.constant 0 : index
    %26 = vector.load %arg2[%c56, %c0_15] : memref<184x128xf32, #tpu.memory_space<vmem>>, vector<32x32xf32>
    %27 = vector.broadcast %25 : vector<32x1xf32> to vector<32x32xf32>
    %28 = arith.mulf %27, %26 : vector<32x32xf32>
    %c88 = arith.constant 88 : index
    %c0_16 = arith.constant 0 : index
    %29 = vector.load %arg2[%c88, %c0_16] : memref<184x128xf32, #tpu.memory_space<vmem>>, vector<2x32xf32>
    %cst_17 = arith.constant dense<0.000000e+00> : vector<2x32xf32>
    %30 = tpu.matmul %29, %28, %cst_17 {dimension_numbers = #tpu.dot_dimension_numbers<[1], [0], [0], [1], [0, 0, 1, 1], [], []>} : vector<2x32xf32>, vector<32x32xf32>, vector<2x32xf32> -> vector<2x32xf32>
    %c96 = arith.constant 96 : index
    %c0_18 = arith.constant 0 : index
    %31 = vector.load %arg2[%c96, %c0_18] : memref<184x128xf32, #tpu.memory_space<vmem>>, vector<1x32xf32>
    %32 = vector.broadcast %31 : vector<1x32xf32> to vector<2x32xf32>
    %33 = arith.addf %30, %32 : vector<2x32xf32>
    %cst_19 = arith.constant 0.00999999977 : f32
    %34 = vector.broadcast %cst_19 : f32 to vector<2x32xf32>
    %35 = arith.mulf %34, %33 : vector<2x32xf32>
    %36 = arith.maximumf %33, %35 : vector<2x32xf32>
    %c104 = arith.constant 104 : index
    %c0_20 = arith.constant 0 : index
    %37 = vector.load %arg2[%c104, %c0_20] : memref<184x128xf32, #tpu.memory_space<vmem>>, vector<1x32xf32>
    %c112 = arith.constant 112 : index
    %c0_21 = arith.constant 0 : index
    %38 = vector.load %arg2[%c112, %c0_21] : memref<184x128xf32, #tpu.memory_space<vmem>>, vector<1x32xf32>
    %cst_22 = arith.constant dense<0.000000e+00> : vector<32xf32>
    %39 = vector.multi_reduction <add>, %36, %cst_22 [0] : vector<2x32xf32> to vector<32xf32>
    %40 = vector.shape_cast %39 : vector<32xf32> to vector<1x32xf32>
    %cst_23 = arith.constant 2.000000e+00 : f32
    %41 = vector.broadcast %cst_23 : f32 to vector<1x32xf32>
    %42 = arith.divf %40, %41 : vector<1x32xf32>
    %43 = vector.broadcast %42 : vector<1x32xf32> to vector<2x32xf32>
    %44 = arith.subf %36, %43 : vector<2x32xf32>
    %45 = arith.mulf %44, %44 : vector<2x32xf32>
    %cst_24 = arith.constant dense<0.000000e+00> : vector<32xf32>
    %46 = vector.multi_reduction <add>, %45, %cst_24 [0] : vector<2x32xf32> to vector<32xf32>
    %47 = vector.shape_cast %46 : vector<32xf32> to vector<1x32xf32>
    %cst_25 = arith.constant 2.000000e+00 : f32
    %48 = vector.broadcast %cst_25 : f32 to vector<1x32xf32>
    %49 = arith.divf %47, %48 : vector<1x32xf32>
    %cst_26 = arith.constant 9.99999974E-6 : f32
    %50 = vector.broadcast %cst_26 : f32 to vector<1x32xf32>
    %51 = arith.addf %49, %50 : vector<1x32xf32>
    %52 = math.rsqrt %51 : vector<1x32xf32>
    %53 = vector.broadcast %52 : vector<1x32xf32> to vector<2x32xf32>
    %54 = arith.mulf %44, %53 : vector<2x32xf32>
    %55 = vector.broadcast %37 : vector<1x32xf32> to vector<2x32xf32>
    %56 = arith.mulf %54, %55 : vector<2x32xf32>
    %57 = vector.broadcast %38 : vector<1x32xf32> to vector<2x32xf32>
    %58 = arith.addf %56, %57 : vector<2x32xf32>
    %c120 = arith.constant 120 : index
    %c0_27 = arith.constant 0 : index
    %59 = vector.load %arg2[%c120, %c0_27] : memref<184x128xf32, #tpu.memory_space<vmem>>, vector<32x16xf32>
    %cst_28 = arith.constant dense<0.000000e+00> : vector<2x16xf32>
    %60 = tpu.matmul %58, %59, %cst_28 {dimension_numbers = #tpu.dot_dimension_numbers<[1], [0], [0], [1], [0, 0, 1, 1], [], []>} : vector<2x32xf32>, vector<32x16xf32>, vector<2x16xf32> -> vector<2x16xf32>
    %c152 = arith.constant 152 : index
    %c0_29 = arith.constant 0 : index
    %61 = vector.load %arg2[%c152, %c0_29] : memref<184x128xf32, #tpu.memory_space<vmem>>, vector<1x16xf32>
    %62 = vector.broadcast %61 : vector<1x16xf32> to vector<2x16xf32>
    %63 = arith.addf %60, %62 : vector<2x16xf32>
    %cst_30 = arith.constant 0.00999999977 : f32
    %64 = vector.broadcast %cst_30 : f32 to vector<2x16xf32>
    %65 = arith.mulf %64, %63 : vector<2x16xf32>
    %66 = arith.maximumf %63, %65 : vector<2x16xf32>
    %c160 = arith.constant 160 : index
    %c0_31 = arith.constant 0 : index
    %67 = vector.load %arg2[%c160, %c0_31] : memref<184x128xf32, #tpu.memory_space<vmem>>, vector<1x16xf32>
    %c168 = arith.constant 168 : index
    %c0_32 = arith.constant 0 : index
    %68 = vector.load %arg2[%c168, %c0_32] : memref<184x128xf32, #tpu.memory_space<vmem>>, vector<1x16xf32>
    %cst_33 = arith.constant dense<0.000000e+00> : vector<16xf32>
    %69 = vector.multi_reduction <add>, %66, %cst_33 [0] : vector<2x16xf32> to vector<16xf32>
    %70 = vector.shape_cast %69 : vector<16xf32> to vector<1x16xf32>
    %cst_34 = arith.constant 2.000000e+00 : f32
    %71 = vector.broadcast %cst_34 : f32 to vector<1x16xf32>
    %72 = arith.divf %70, %71 : vector<1x16xf32>
    %73 = vector.broadcast %72 : vector<1x16xf32> to vector<2x16xf32>
    %74 = arith.subf %66, %73 : vector<2x16xf32>
    %75 = arith.mulf %74, %74 : vector<2x16xf32>
    %cst_35 = arith.constant dense<0.000000e+00> : vector<16xf32>
    %76 = vector.multi_reduction <add>, %75, %cst_35 [0] : vector<2x16xf32> to vector<16xf32>
    %77 = vector.shape_cast %76 : vector<16xf32> to vector<1x16xf32>
    %cst_36 = arith.constant 2.000000e+00 : f32
    %78 = vector.broadcast %cst_36 : f32 to vector<1x16xf32>
    %79 = arith.divf %77, %78 : vector<1x16xf32>
    %cst_37 = arith.constant 9.99999974E-6 : f32
    %80 = vector.broadcast %cst_37 : f32 to vector<1x16xf32>
    %81 = arith.addf %79, %80 : vector<1x16xf32>
    %82 = math.rsqrt %81 : vector<1x16xf32>
    %83 = vector.broadcast %82 : vector<1x16xf32> to vector<2x16xf32>
    %84 = arith.mulf %74, %83 : vector<2x16xf32>
    %85 = vector.broadcast %67 : vector<1x16xf32> to vector<2x16xf32>
    %86 = arith.mulf %84, %85 : vector<2x16xf32>
    %87 = vector.broadcast %68 : vector<1x16xf32> to vector<2x16xf32>
    %88 = arith.addf %86, %87 : vector<2x16xf32>
    %c176 = arith.constant 176 : index
    %c0_38 = arith.constant 0 : index
    %89 = vector.load %arg2[%c176, %c0_38] : memref<184x128xf32, #tpu.memory_space<vmem>>, vector<1x16xf32>
    %cst_39 = arith.constant dense<0.000000e+00> : vector<1x2xf32>
    %90 = tpu.matmul %89, %88, %cst_39 {dimension_numbers = #tpu.dot_dimension_numbers<[1], [1], [0], [0], [0, 0, 1, 0], [], []>} : vector<1x16xf32>, vector<2x16xf32>, vector<1x2xf32> -> vector<1x2xf32>
    %c0_40 = arith.constant 0 : index
    %91 = memref.load %arg3[%c0_40] : memref<1xf32, #tpu.memory_space<smem>>
    %92 = vector.broadcast %91 : f32 to vector<1x2xf32>
    %93 = arith.addf %90, %92 : vector<1x2xf32>
    %c0_41 = arith.constant 0 : index
    %c0_42 = arith.constant 0 : index
    %c0_43 = arith.constant 0 : index
    %94 = vector.load %arg4[%c0_41, %c0_42, %c0_43] : memref<1x1x2xf32, #tpu.memory_space<vmem>>, vector<1x1x2xf32>
    %95 = vector.shape_cast %94 : vector<1x1x2xf32> to vector<1x2xf32>
    %96 = vector.shape_cast %93 : vector<1x2xf32> to vector<1x1x2xf32>
    tpu.vector_store %arg4[%c0_41, %c0_42, %c0_43], %96 {strides = array<i32>} : memref<1x1x2xf32, #tpu.memory_space<vmem>>, vector<1x1x2xf32>,
    return
  }
  func.func @transform_0(%arg0: i32) -> (i32, i32, i32) {
    %c0_i32 = arith.constant 0 : i32
    %c0_i32_0 = arith.constant 0 : i32
    %c0_i32_1 = arith.constant 0 : i32
    return %arg0, %c0_i32, %c0_i32_0 : i32, i32, i32
  }
  func.func @transform_1(%arg0: i32) -> (i32, i32) {
    %c0_i32 = arith.constant 0 : i32
    %c0_i32_0 = arith.constant 0 : i32
    %c0_i32_1 = arith.constant 0 : i32
    return %c0_i32, %c0_i32_0 : i32, i32
  }
  func.func @transform_2(%arg0: i32) -> i32 {
    %c0_i32 = arith.constant 0 : i32
    %c0_i32_0 = arith.constant 0 : i32
    return %c0_i32 : i32
  }
  func.func @transform_3(%arg0: i32) -> (i32, i32, i32) {
    %c0_i32 = arith.constant 0 : i32
    %c0_i32_0 = arith.constant 0 : i32
    %c0_i32_1 = arith.constant 0 : i32
    return %arg0, %c0_i32, %c0_i32_0 : i32, i32, i32
  }
}

</mosaic_0001>

<llo_original>
// kernel: forward.1
$region0: #{forward.1}
  #allocation0 [shape = 'u32[]', space=smem, size = 0x4, offset = 0x4, fixed_abs, tag = 'smem constant byte address 0x4 - core index']
  #allocation1 [shape = 'u32[144,128]{1,0:T(1,128)}', space=vmem, size = 0x12000, scoped, tag = 'internal scratch']
  #allocation2 [shape = 'f32[1]{0:T(128)S(6)}', space=smem, size = 0x200, scoped, tag = 'scoped memory for forward.1']
  %s0 = inlined_call_operand.vmem [shape: f32[8,32,8], index: 0, kind: input, shape index: {}]
  %s1 = inlined_call_operand.vmem [shape: f32[184,128], index: 1, kind: input, shape index: {}]
  %s2 = inlined_call_operand.<no memory space> [shape: f32[1], index: 2, kind: input, shape index: {}]
  %s3 = inlined_call_operand.vmem [shape: f32[8,1,2], index: 3, kind: output, shape index: {}]
  %s4 = sld [smem:[#allocation0]]
  $region45: #{forward.1} parent=0
    _
  %s6 = ssub.s32 1, %s4
  %s7 = scalar_select 0, %s6, %s4
  %8 = sst [smem:[#allocation2]] %s2
  loop: start=0, step=1, limit=10
  $region2: #{forward.1} parent=0 // loop_pre_header
    _
  $region3: #{forward.1} parent=0 // loop_header
    %s10 = sphi 0, %s14
    %p11 = scmp.ge.s32.totalorder %s10, 10
    %s20 = sphi 0, %s22
    %s23 = sphi 0, %s20
    %s24 = sphi 0, %s23
    %s40 = sphi 0, %s24
    %s44 = sphi 0, %s44
    %s46 = sphi 0, %s44
    %s47 = sphi 0, %s46
    %s61 = sphi 0, %s47
    %s65 = sphi 0, %s65
    %s67 = sphi 0, %s65
    %s68 = sphi 0, %s67
    %s82 = sphi 0, %s68
    %s88 = sphi 0, %s90
    %s91 = sphi 0, %s88
    %s92 = sphi 0, %s91
    %s108 = sphi 0, %s92
  $region4: #{forward.1} parent=0 // loop_header_branch
    %13 = sbr.rel (%p11) target = $region8
  $region5: #{forward.1} parent=0 // loop_body
    %s15 = ssub.s32 %s10, 1
    %s16 = ssub.s32 %s10, 2
    %s17 = sadd.s32 %s10, 1
    %s18 = ssub.s32 %s10, %s17
    %p19 = scmp.eq.s32.totalorder %s18, 0
    %s21 = sadd.s32 %s20, 1
    %s22 = scalar_select %p19, %s20, %s21
    %p25 = pneg %p19
    %p26 = scmp.eq.s32.totalorder %s10, 7
    %p27 = por %p25, %p26
    %p28 = scmp.ne.s32.totalorder %s20, %s23
    %p29 = scmp.eq.s32.totalorder %s10, 0
    %p30 = por %p28, %p29
    %p31 = scmp.ne.s32.totalorder %s20, %s23
    %p32 = scmp.eq.s32.totalorder %s15, 7
    %p33 = por %p31, %p32
    %p34 = scmp.ne.s32.totalorder %s23, %s24
    %p35 = scmp.eq.s32.totalorder %s15, 0
    %p36 = por %p34, %p35
    %p37 = scmp.ne.s32.totalorder %s23, %s24
    %p38 = scmp.eq.s32.totalorder %s16, 7
    %p39 = por %p37, %p38
    %p41 = scmp.ne.s32.totalorder %s24, %s40
    %p42 = scmp.eq.s32.totalorder %s16, 0
    %p43 = por %p41, %p42
    %s45 = sadd.s32 %s44, 1
    %p48 = scmp.eq.s32.totalorder %s10, 7
    %p49 = scmp.ne.s32.totalorder %s44, %s46
    %p50 = scmp.eq.s32.totalorder %s10, 0
    %p51 = por %p49, %p50
    %p52 = scmp.ne.s32.totalorder %s44, %s46
    %p53 = scmp.eq.s32.totalorder %s15, 7
    %p54 = por %p52, %p53
    %p55 = scmp.ne.s32.totalorder %s46, %s47
    %p56 = scmp.eq.s32.totalorder %s15, 0
    %p57 = por %p55, %p56
    %p58 = scmp.ne.s32.totalorder %s46, %s47
    %p59 = scmp.eq.s32.totalorder %s16, 7
    %p60 = por %p58, %p59
    %p62 = scmp.ne.s32.totalorder %s47, %s61
    %p63 = scmp.eq.s32.totalorder %s16, 0
    %p64 = por %p62, %p63
    %s66 = sadd.s32 %s65, 1
    %p69 = scmp.eq.s32.totalorder %s10, 7
    %p70 = scmp.ne.s32.totalorder %s65, %s67
    %p71 = scmp.eq.s32.totalorder %s10, 0
    %p72 = por %p70, %p71
    %p73 = scmp.ne.s32.totalorder %s65, %s67
    %p74 = scmp.eq.s32.totalorder %s15, 7
    %p75 = por %p73, %p74
    %p76 = scmp.ne.s32.totalorder %s67, %s68
    %p77 = scmp.eq.s32.totalorder %s15, 0
    %p78 = por %p76, %p77
    %p79 = scmp.ne.s32.totalorder %s67, %s68
    %p80 = scmp.eq.s32.totalorder %s16, 7
    %p81 = por %p79, %p80
    %p83 = scmp.ne.s32.totalorder %s68, %s82
    %p84 = scmp.eq.s32.totalorder %s16, 0
    %p85 = por %p83, %p84
    %s86 = ssub.s32 %s10, %s17
    %p87 = scmp.eq.s32.totalorder %s86, 0
    %s89 = sadd.s32 %s88, 1
    %s90 = scalar_select %p87, %s88, %s89
    %p93 = pneg %p87
    %p94 = scmp.eq.s32.totalorder %s10, 7
    %p95 = por %p93, %p94
    %p96 = scmp.ne.s32.totalorder %s88, %s91
    %p97 = scmp.eq.s32.totalorder %s10, 0
    %p98 = por %p96, %p97
    %p99 = scmp.ne.s32.totalorder %s88, %s91
    %p100 = scmp.eq.s32.totalorder %s15, 7
    %p101 = por %p99, %p100
    %p102 = scmp.ne.s32.totalorder %s91, %s92
    %p103 = scmp.eq.s32.totalorder %s15, 0
    %p104 = por %p102, %p103
    %p105 = scmp.ne.s32.totalorder %s91, %s92
    %p106 = scmp.eq.s32.totalorder %s16, 7
    %p107 = por %p105, %p106
    %p109 = scmp.ne.s32.totalorder %s92, %s108
    %p110 = scmp.eq.s32.totalorder %s16, 0
    %p111 = por %p109, %p110
    %p112 = scmp.le.s32.totalorder 1, %s10
    %p113 = scmp.lt.s32.totalorder %s10, 9
    %p114 = pnand %p112, %p113
    %p115 = pneg %p114
    // Predicated region
    $region9: #{forward.1} parent=5 // pred_check
      _
    $region10: #{forward.1} parent=5 // pred_check_branch
      %117 = sbr.rel (%p114) target = $region12
    $region11: #{forward.1} parent=5 // pred_region
      %s118 = ssub.s32 %s10, 1
      // Predicated region
      $region13: #{forward.1} parent=11 // pred_check
        %p119 = pneg %p57
      $region14: #{forward.1} parent=11 // pred_check_branch
        %121 = sbr.rel (%p119) target = $region16
      $region15: #{forward.1} parent=11 // pred_region
        _
      $region16: #{forward.1} parent=11 // pred_fallthru
        _
      // Predicated region
      $region17: #{forward.1} parent=11 // pred_check
        %p122 = pneg %p78
      $region18: #{forward.1} parent=11 // pred_check_branch
        %124 = sbr.rel (%p122) target = $region20
      $region19: #{forward.1} parent=11 // pred_region
        _
      $region20: #{forward.1} parent=11 // pred_fallthru
        _
    $region12: #{forward.1} parent=5 // pred_fallthru
      _
    %p125 = scmp.lt.s32.totalorder %s10, 8
    // Predicated region
    $region21: #{forward.1} parent=5 // pred_check
      %p126 = pneg %p125
    $region22: #{forward.1} parent=5 // pred_check_branch
      %128 = sbr.rel (%p126) target = $region24
    $region23: #{forward.1} parent=5 // pred_region
      // Predicated region
      $region25: #{forward.1} parent=23 // pred_check
        %p129 = pneg %p30
      $region26: #{forward.1} parent=23 // pred_check_branch
        %131 = sbr.rel (%p129) target = $region28
      $region27: #{forward.1} parent=23 // pred_region
        %p132 = scmp.lt.s32.totalorder %s10, 7
        %s133 = scalar_select %p132, %s10, 7
        %s134 = smul.addr %s133, 4
        %s135 = smul.addr %s134, 8
        %s136 = scalar_lea.vmem %s0, %s135
      $region28: #{forward.1} parent=23 // pred_fallthru
        _
    $region24: #{forward.1} parent=5 // pred_fallthru
      _
    %p137 = scmp.le.s32.totalorder 1, %s10
    %p138 = scmp.lt.s32.totalorder %s10, 9
    %p139 = pnand %p137, %p138
    %p140 = pneg %p139
    // Predicated region
    $region29: #{forward.1} parent=5 // pred_check
      _
    $region30: #{forward.1} parent=5 // pred_check_branch
      %142 = sbr.rel (%p139) target = $region32
    $region31: #{forward.1} parent=5 // pred_region
      %s143 = ssub.s32 %s10, 1
      %p144 = scmp.lt.s32.totalorder %s15, 7
      %s145 = scalar_select %p144, %s15, 7
      %s146 = smul.addr %s145, 4
      %s147 = smul.addr %s146, 8
      %s148 = scalar_lea.vmem %s0, %s147
      %p149 = pneg %p36
      %p150 = pneg %p33
      %p151 = pneg %p57
      %p152 = pneg %p54
      %p153 = pneg %p78
      %p154 = pneg %p75
      %p155 = pneg %p104
      %p156 = pneg %p101
      %p157 = scmp.lt.s32.totalorder %s15, 7
      %s158 = scalar_select %p157, %s15, 7
      %s159 = scalar_lea.vmem %s3, %s158
      %p160 = scmp.lt.s32.totalorder %s15, 7
      %s161 = scalar_select %p160, %s15, 7
      %s162 = smul.addr %s161, 4
      %s163 = smul.addr %s162, 8
      %s164 = scalar_lea.vmem %s0, %s163
      %p165 = scmp.lt.s32.totalorder %s15, 7
      %s166 = scalar_select %p165, %s15, 7
      %s167 = scalar_lea.vmem %s3, %s166
      %v168 = vld [vmem:[%s164] sm:$0xff]
      %v169 = vld [vmem:[%s164 + $0x8] sm:$0xff]
      %v170 = vld [vmem:[%s164 + $0x10] sm:$0xff]
      %v171 = vld [vmem:[%s164 + $0x18] sm:$0xff]
      %v172 = vld [vmem:[%s1] sm:$0xff]
      %v173 = vld [vmem:[%s1 + $0x10] sm:$0x1]
      %v174 = vlaneseq
      %v175 = vshrl.u32 %v174, 7
      %v176 = vsub.s32 0, %v175
      %v177 = vrot.slane %v173, %v176
      %vm178 = vcmask 64512
      %v180 = vsel %vm178, %v168, 0
      %v183 = vsel %vm178, %v169, 0
      %v186 = vsel %vm178, %v170, 0
      %v189 = vsel %vm178, %v171, 0
      %191 = vmatprep.subr.mxu0 0.0
      %192 = vmatpush1.msra.mxu0 %v172
      %193 = vmatprep.subr.mxu0 0.0
      %194 = vmatpush1.msra.mxu0 0.0
      %195 = vmatprep.subr.mxu0 0.0
      %196 = vmatpush1.msra.mxu0 0.0
      %197 = vmatprep.subr.mxu0 0.0
      %198 = vmatpush1.msra.mxu0 0.0
      %199 = vmatprep.subr.mxu0 0.0
      %200 = vmatpush1.msra.mxu0 0.0
      %201 = vmatprep.subr.mxu0 0.0
      %202 = vmatpush1.msra.mxu0 0.0
      %203 = vmatprep.subr.mxu0 0.0
      %204 = vmatpush1.msra.mxu0 0.0
      %205 = vmatprep.subr.mxu0 0.0
      %206 = vmatpush1.msra.mxu0 0.0
      %207 = vmatprep.subr.mxu0 0.0
      %208 = vmatpush1.msra.mxu0 0.0
      %209 = vmatprep.subr.mxu0 0.0
      %210 = vmatpush1.msra.mxu0 0.0
      %211 = vmatprep.subr.mxu0 0.0
      %212 = vmatpush1.msra.mxu0 0.0
      %213 = vmatprep.subr.mxu0 0.0
      %214 = vmatpush1.msra.mxu0 0.0
      %215 = vmatprep.subr.mxu0 0.0
      %216 = vmatpush1.msra.mxu0 0.0
      %217 = vmatprep.subr.mxu0 0.0
      %218 = vmatpush1.msra.mxu0 0.0
      %219 = vmatprep.subr.mxu0 0.0
      %220 = vmatpush1.msra.mxu0 0.0
      %221 = vmatprep.subr.mxu0 0.0
      %222 = vmatpush1.msra.mxu0 0.0
      %223 = vmatprep.subr.mxu0 0.0
      %224 = vmatpush1.msra.mxu0 0.0
      %225 = vmatprep.subr.mxu0 0.0
      %226 = vmatpush1.msra.mxu0 0.0
      %227 = vmatprep.subr.mxu0 0.0
      %228 = vmatpush1.msra.mxu0 0.0
      %229 = vmatprep.subr.mxu0 0.0
      %230 = vmatpush1.msra.mxu0 0.0
      %231 = vmatprep.subr.mxu0 0.0
      %232 = vmatpush1.msra.mxu0 0.0
      %233 = vmatprep.subr.mxu0 0.0
      %234 = vmatpush1.msra.mxu0 0.0
      %235 = vmatprep.subr.mxu0 0.0
      %236 = vmatpush1.msra.mxu0 0.0
      %237 = vmatprep.subr.mxu0 0.0
      %238 = vmatpush1.msra.mxu0 0.0
      %239 = vmatprep.subr.mxu0 0.0
      %240 = vmatpush1.msra.mxu0 0.0
      %241 = vmatprep.subr.mxu0 0.0
      %242 = vmatpush1.msra.mxu0 0.0
      %243 = vmatprep.subr.mxu0 0.0
      %244 = vmatpush1.msra.mxu0 0.0
      %245 = vmatprep.subr.mxu0 0.0
      %246 = vmatpush1.msra.mxu0 0.0
      %247 = vmatprep.subr.mxu0 0.0
      %248 = vmatpush1.msra.mxu0 0.0
      %249 = vmatprep.subr.mxu0 0.0
      %250 = vmatpush1.msra.mxu0 0.0
      %251 = vmatprep.subr.mxu0 0.0
      %252 = vmatpush1.msra.mxu0 0.0
      %253 = vmatprep.subr.mxu0 0.0
      %254 = vmatpush1.msra.mxu0 0.0
      %255 = vmatprep.mubr.f32.mxu0 0.0
      %256 = vmatmul.mubr.f32.gmra.mrb[0].mxu0 %v180
      %v257 = vpop.f32.mrb[0].mxu0
      %v258 = vadd.f32 %v177, %v257
      %v259 = vpop.f32.mrb[0].mxu0
      %260 = vmatprep.mubr.f32.mxu0 0.0
      %261 = vmatmul.mubr.f32.gmra.mrb[0].mxu0 %v183
      %v262 = vpop.f32.mrb[0].mxu0
      %v263 = vadd.f32 %v177, %v262
      %v264 = vpop.f32.mrb[0].mxu0
      %265 = vmatprep.mubr.f32.mxu0 0.0
      %266 = vmatmul.mubr.f32.gmra.mrb[0].mxu0 %v186
      %v267 = vpop.f32.mrb[0].mxu0
      %v268 = vadd.f32 %v177, %v267
      %v269 = vpop.f32.mrb[0].mxu0
      %270 = vmatprep.mubr.f32.mxu0 0.0
      %271 = vmatmul.mubr.f32.gmra.mrb[0].mxu0 %v189
      %v272 = vpop.f32.mrb[0].mxu0
      %v273 = vadd.f32 %v177, %v272
      %v274 = vpop.f32.mrb[0].mxu0
      %275 = vdwg.mxu0
      %v276 = vld [vmem:[%s1 + $0x8] sm:$0xff]
      %v277 = vld [vmem:[%s1 + $0x18] sm:$0x1]
      %v278 = vlaneseq
      %v279 = vshrl.u32 %v278, 7
      %v280 = vsub.s32 0, %v279
      %v281 = vrot.slane %v277, %v280
      %282 = vmatprep.subr.mxu0 0.0
      %283 = vmatpush1.msra.mxu0 %v276
      %284 = vmatprep.subr.mxu0 0.0
      %285 = vmatpush1.msra.mxu0 0.0
      %286 = vmatprep.subr.mxu0 0.0
      %287 = vmatpush1.msra.mxu0 0.0
      %288 = vmatprep.subr.mxu0 0.0
      %289 = vmatpush1.msra.mxu0 0.0
      %290 = vmatprep.subr.mxu0 0.0
      %291 = vmatpush1.msra.mxu0 0.0
      %292 = vmatprep.subr.mxu0 0.0
      %293 = vmatpush1.msra.mxu0 0.0
      %294 = vmatprep.subr.mxu0 0.0
      %295 = vmatpush1.msra.mxu0 0.0
      %296 = vmatprep.subr.mxu0 0.0
      %297 = vmatpush1.msra.mxu0 0.0
      %298 = vmatprep.subr.mxu0 0.0
      %299 = vmatpush1.msra.mxu0 0.0
      %300 = vmatprep.subr.mxu0 0.0
      %301 = vmatpush1.msra.mxu0 0.0
      %302 = vmatprep.subr.mxu0 0.0
      %303 = vmatpush1.msra.mxu0 0.0
      %304 = vmatprep.subr.mxu0 0.0
      %305 = vmatpush1.msra.mxu0 0.0
      %306 = vmatprep.subr.mxu0 0.0
      %307 = vmatpush1.msra.mxu0 0.0
      %308 = vmatprep.subr.mxu0 0.0
      %309 = vmatpush1.msra.mxu0 0.0
      %310 = vmatprep.subr.mxu0 0.0
      %311 = vmatpush1.msra.mxu0 0.0
      %312 = vmatprep.subr.mxu0 0.0
      %313 = vmatpush1.msra.mxu0 0.0
      %314 = vmatprep.subr.mxu0 0.0
      %315 = vmatpush1.msra.mxu0 0.0
      %316 = vmatprep.subr.mxu0 0.0
      %317 = vmatpush1.msra.mxu0 0.0
      %318 = vmatprep.subr.mxu0 0.0
      %319 = vmatpush1.msra.mxu0 0.0
      %320 = vmatprep.subr.mxu0 0.0
      %321 = vmatpush1.msra.mxu0 0.0
      %322 = vmatprep.subr.mxu0 0.0
      %323 = vmatpush1.msra.mxu0 0.0
      %324 = vmatprep.subr.mxu0 0.0
      %325 = vmatpush1.msra.mxu0 0.0
      %326 = vmatprep.subr.mxu0 0.0
      %327 = vmatpush1.msra.mxu0 0.0
      %328 = vmatprep.subr.mxu0 0.0
      %329 = vmatpush1.msra.mxu0 0.0
      %330 = vmatprep.subr.mxu0 0.0
      %331 = vmatpush1.msra.mxu0 0.0
      %332 = vmatprep.subr.mxu0 0.0
      %333 = vmatpush1.msra.mxu0 0.0
      %334 = vmatprep.subr.mxu0 0.0
      %335 = vmatpush1.msra.mxu0 0.0
      %336 = vmatprep.subr.mxu0 0.0
      %337 = vmatpush1.msra.mxu0 0.0
      %338 = vmatprep.subr.mxu0 0.0
      %339 = vmatpush1.msra.mxu0 0.0
      %340 = vmatprep.subr.mxu0 0.0
      %341 = vmatpush1.msra.mxu0 0.0
      %342 = vmatprep.subr.mxu0 0.0
      %343 = vmatpush1.msra.mxu0 0.0
      %344 = vmatprep.subr.mxu0 0.0
      %345 = vmatpush1.msra.mxu0 0.0
      %346 = vmatprep.mubr.f32.mxu0 0.0
      %347 = vmatmul.mubr.f32.gmra.mrb[0].mxu0 %v180
      %v348 = vpop.f32.mrb[0].mxu0
      %v349 = vadd.f32 %v281, %v348
      %v350 = vpop.f32.mrb[0].mxu0
      %351 = vmatprep.mubr.f32.mxu0 0.0
      %352 = vmatmul.mubr.f32.gmra.mrb[0].mxu0 %v183
      %v353 = vpop.f32.mrb[0].mxu0
      %v354 = vadd.f32 %v281, %v353
      %v355 = vpop.f32.mrb[0].mxu0
      %356 = vmatprep.mubr.f32.mxu0 0.0
      %357 = vmatmul.mubr.f32.gmra.mrb[0].mxu0 %v186
      %v358 = vpop.f32.mrb[0].mxu0
      %v359 = vadd.f32 %v281, %v358
      %v360 = vpop.f32.mrb[0].mxu0
      %361 = vmatprep.mubr.f32.mxu0 0.0
      %362 = vmatmul.mubr.f32.gmra.mrb[0].mxu0 %v189
      %v363 = vpop.f32.mrb[0].mxu0
      %v364 = vadd.f32 %v281, %v363
      %v365 = vpop.f32.mrb[0].mxu0
      %366 = vdwg.mxu0
      %v367 = vmax.f32 %v258, %v349
      %v368 = vmax.f32 %v263, %v354
      %v369 = vmax.f32 %v268, %v359
      %v370 = vmax.f32 %v273, %v364
      %v371 = vmul.f32 %v367, 0.01
      %v372 = vmul.f32 %v368, 0.01
      %v373 = vmul.f32 %v369, 0.01
      %v374 = vmul.f32 %v370, 0.01
      %v375 = vmax.f32 %v367, %v371
      %v376 = vmax.f32 %v368, %v372
      %v377 = vmax.f32 %v369, %v373
      %v378 = vmax.f32 %v370, %v374
      %v379 = vld [vmem:[%s1 + $0x20] sm:$0xf]
      %v380 = vld [vmem:[%s1 + $0x28] sm:$0x1]
      %v381 = vlaneseq
      %v382 = vshrl.u32 %v381, 7
      %v383 = vsub.s32 0, %v382
      %v384 = vrot.slane %v380, %v383
      %vm385 = vcmask 31744
      %v387 = vsel %vm385, %v375, 0
      %v390 = vsel %vm385, %v376, 0
      %v393 = vsel %vm385, %v377, 0
      %v396 = vsel %vm385, %v378, 0
      %vm398 = vcmask 1043456
      %v400 = vsel %vm398, %v379, 0
      %402 = vmatprep.subr.mxu0 0.0
      %403 = vmatpush1.msra.mxu0 %v400
      %404 = vmatprep.subr.mxu0 0.0
      %405 = vmatpush1.msra.mxu0 0.0
      %406 = vmatprep.subr.mxu0 0.0
      %407 = vmatpush1.msra.mxu0 0.0
      %408 = vmatprep.subr.mxu0 0.0
      %409 = vmatpush1.msra.mxu0 0.0
      %410 = vmatprep.subr.mxu0 0.0
      %411 = vmatpush1.msra.mxu0 0.0
      %412 = vmatprep.subr.mxu0 0.0
      %413 = vmatpush1.msra.mxu0 0.0
      %414 = vmatprep.subr.mxu0 0.0
      %415 = vmatpush1.msra.mxu0 0.0
      %416 = vmatprep.subr.mxu0 0.0
      %417 = vmatpush1.msra.mxu0 0.0
      %418 = vmatprep.subr.mxu0 0.0
      %419 = vmatpush1.msra.mxu0 0.0
      %420 = vmatprep.subr.mxu0 0.0
      %421 = vmatpush1.msra.mxu0 0.0
      %422 = vmatprep.subr.mxu0 0.0
      %423 = vmatpush1.msra.mxu0 0.0
      %424 = vmatprep.subr.mxu0 0.0
      %425 = vmatpush1.msra.mxu0 0.0
      %426 = vmatprep.subr.mxu0 0.0
      %427 = vmatpush1.msra.mxu0 0.0
      %428 = vmatprep.subr.mxu0 0.0
      %429 = vmatpush1.msra.mxu0 0.0
      %430 = vmatprep.subr.mxu0 0.0
      %431 = vmatpush1.msra.mxu0 0.0
      %432 = vmatprep.subr.mxu0 0.0
      %433 = vmatpush1.msra.mxu0 0.0
      %434 = vmatprep.subr.mxu0 0.0
      %435 = vmatpush1.msra.mxu0 0.0
      %436 = vmatprep.subr.mxu0 0.0
      %437 = vmatpush1.msra.mxu0 0.0
      %438 = vmatprep.subr.mxu0 0.0
      %439 = vmatpush1.msra.mxu0 0.0
      %440 = vmatprep.subr.mxu0 0.0
      %441 = vmatpush1.msra.mxu0 0.0
      %442 = vmatprep.subr.mxu0 0.0
      %443 = vmatpush1.msra.mxu0 0.0
      %444 = vmatprep.subr.mxu0 0.0
      %445 = vmatpush1.msra.mxu0 0.0
      %446 = vmatprep.subr.mxu0 0.0
      %447 = vmatpush1.msra.mxu0 0.0
      %448 = vmatprep.subr.mxu0 0.0
      %449 = vmatpush1.msra.mxu0 0.0
      %450 = vmatprep.subr.mxu0 0.0
      %451 = vmatpush1.msra.mxu0 0.0
      %452 = vmatprep.subr.mxu0 0.0
      %453 = vmatpush1.msra.mxu0 0.0
      %454 = vmatprep.subr.mxu0 0.0
      %455 = vmatpush1.msra.mxu0 0.0
      %456 = vmatprep.subr.mxu0 0.0
      %457 = vmatpush1.msra.mxu0 0.0
      %458 = vmatprep.subr.mxu0 0.0
      %459 = vmatpush1.msra.mxu0 0.0
      %460 = vmatprep.subr.mxu0 0.0
      %461 = vmatpush1.msra.mxu0 0.0
      %462 = vmatprep.subr.mxu0 0.0
      %463 = vmatpush1.msra.mxu0 0.0
      %464 = vmatprep.subr.mxu0 0.0
      %465 = vmatpush1.msra.mxu0 0.0
      %466 = vmatprep.mubr.f32.mxu0 0.0
      %467 = vmatmul.mubr.f32.gmra.mrb[0].mxu0 %v387
      %v468 = vpop.f32.mrb[0].mxu0
      %v469 = vadd.f32 %v384, %v468
      %v470 = vpop.f32.mrb[0].mxu0
      %471 = vmatprep.mubr.f32.mxu0 0.0
      %472 = vmatmul.mubr.f32.gmra.mrb[0].mxu0 %v390
      %v473 = vpop.f32.mrb[0].mxu0
      %v474 = vadd.f32 %v384, %v473
      %v475 = vpop.f32.mrb[0].mxu0
      %476 = vmatprep.mubr.f32.mxu0 0.0
      %477 = vmatmul.mubr.f32.gmra.mrb[0].mxu0 %v393
      %v478 = vpop.f32.mrb[0].mxu0
      %v479 = vadd.f32 %v384, %v478
      %v480 = vpop.f32.mrb[0].mxu0
      %481 = vmatprep.mubr.f32.mxu0 0.0
      %482 = vmatmul.mubr.f32.gmra.mrb[0].mxu0 %v396
      %v483 = vpop.f32.mrb[0].mxu0
      %v484 = vadd.f32 %v384, %v483
      %v485 = vpop.f32.mrb[0].mxu0
      %486 = vdwg.mxu0
      %v487 = vmul.f32 %v469, 0.01
      %v488 = vmul.f32 %v474, 0.01
      %v489 = vmul.f32 %v479, 0.01
      %v490 = vmul.f32 %v484, 0.01
      %v491 = vmax.f32 %v469, %v487
      %v492 = vmax.f32 %v474, %v488
      %v493 = vmax.f32 %v479, %v489
      %v494 = vmax.f32 %v484, %v490
      %v495 = vld [vmem:[%s1 + $0x30] sm:$0xff]
      %v497 = vsel %vm178, %v491, 0
      %v500 = vsel %vm178, %v492, 0
      %v503 = vsel %vm178, %v493, 0
      %v506 = vsel %vm178, %v494, 0
      %508 = vmatprep.subr.mxu0 0.0
      %509 = vmatpush1.msra.mxu0 %v495
      %510 = vmatprep.subr.mxu0 0.0
      %511 = vmatpush1.msra.mxu0 0.0
      %512 = vmatprep.subr.mxu0 0.0
      %513 = vmatpush1.msra.mxu0 0.0
      %514 = vmatprep.subr.mxu0 0.0
      %515 = vmatpush1.msra.mxu0 0.0
      %516 = vmatprep.subr.mxu0 0.0
      %517 = vmatpush1.msra.mxu0 0.0
      %518 = vmatprep.subr.mxu0 0.0
      %519 = vmatpush1.msra.mxu0 0.0
      %520 = vmatprep.subr.mxu0 0.0
      %521 = vmatpush1.msra.mxu0 0.0
      %522 = vmatprep.subr.mxu0 0.0
      %523 = vmatpush1.msra.mxu0 0.0
      %524 = vmatprep.subr.mxu0 0.0
      %525 = vmatpush1.msra.mxu0 0.0
      %526 = vmatprep.subr.mxu0 0.0
      %527 = vmatpush1.msra.mxu0 0.0
      %528 = vmatprep.subr.mxu0 0.0
      %529 = vmatpush1.msra.mxu0 0.0
      %530 = vmatprep.subr.mxu0 0.0
      %531 = vmatpush1.msra.mxu0 0.0
      %532 = vmatprep.subr.mxu0 0.0
      %533 = vmatpush1.msra.mxu0 0.0
      %534 = vmatprep.subr.mxu0 0.0
      %535 = vmatpush1.msra.mxu0 0.0
      %536 = vmatprep.subr.mxu0 0.0
      %537 = vmatpush1.msra.mxu0 0.0
      %538 = vmatprep.subr.mxu0 0.0
      %539 = vmatpush1.msra.mxu0 0.0
      %540 = vmatprep.subr.mxu0 0.0
      %541 = vmatpush1.msra.mxu0 0.0
      %542 = vmatprep.subr.mxu0 0.0
      %543 = vmatpush1.msra.mxu0 0.0
      %544 = vmatprep.subr.mxu0 0.0
      %545 = vmatpush1.msra.mxu0 0.0
      %546 = vmatprep.subr.mxu0 0.0
      %547 = vmatpush1.msra.mxu0 0.0
      %548 = vmatprep.subr.mxu0 0.0
      %549 = vmatpush1.msra.mxu0 0.0
      %550 = vmatprep.subr.mxu0 0.0
      %551 = vmatpush1.msra.mxu0 0.0
      %552 = vmatprep.subr.mxu0 0.0
      %553 = vmatpush1.msra.mxu0 0.0
      %554 = vmatprep.subr.mxu0 0.0
      %555 = vmatpush1.msra.mxu0 0.0
      %556 = vmatprep.subr.mxu0 0.0
      %557 = vmatpush1.msra.mxu0 0.0
      %558 = vmatprep.subr.mxu0 0.0
      %559 = vmatpush1.msra.mxu0 0.0
      %560 = vmatprep.subr.mxu0 0.0
      %561 = vmatpush1.msra.mxu0 0.0
      %562 = vmatprep.subr.mxu0 0.0
      %563 = vmatpush1.msra.mxu0 0.0
      %564 = vmatprep.subr.mxu0 0.0
      %565 = vmatpush1.msra.mxu0 0.0
      %566 = vmatprep.subr.mxu0 0.0
      %567 = vmatpush1.msra.mxu0 0.0
      %568 = vmatprep.subr.mxu0 0.0
      %569 = vmatpush1.msra.mxu0 0.0
      %570 = vmatprep.subr.mxu0 0.0
      %571 = vmatpush1.msra.mxu0 0.0
      %572 = vmatprep.mubr.f32.mxu0 0.0
      %573 = vmatmul.mubr.f32.gmra.mrb[0].mxu0 %v497
      %v574 = vpop.f32.mrb[0].mxu0
      %v575 = vadd.f32 0.0, %v574
      %v576 = vpop.f32.mrb[0].mxu0
      %577 = vmatprep.mubr.f32.mxu0 0.0
      %578 = vmatmul.mubr.f32.gmra.mrb[0].mxu0 %v500
      %v579 = vpop.f32.mrb[0].mxu0
      %v580 = vadd.f32 0.0, %v579
      %v581 = vpop.f32.mrb[0].mxu0
      %582 = vmatprep.mubr.f32.mxu0 0.0
      %583 = vmatmul.mubr.f32.gmra.mrb[0].mxu0 %v503
      %v584 = vpop.f32.mrb[0].mxu0
      %v585 = vadd.f32 0.0, %v584
      %v586 = vpop.f32.mrb[0].mxu0
      %587 = vmatprep.mubr.f32.mxu0 0.0
      %588 = vmatmul.mubr.f32.gmra.mrb[0].mxu0 %v506
      %v589 = vpop.f32.mrb[0].mxu0
      %v590 = vadd.f32 0.0, %v589
      %v591 = vpop.f32.mrb[0].mxu0
      %592 = vdwg.mxu0
      %v593 = vld [vmem:[%s1 + $0x38] sm:$0xff]
      %v594 = vld [vmem:[%s1 + $0x40] sm:$0xff]
      %v595 = vld [vmem:[%s1 + $0x48] sm:$0xff]
      %v596 = vld [vmem:[%s1 + $0x50] sm:$0xff]
      %598 = vset.pattern.permute.xlu0 0
      %599 = vperm.xlu0 %598, %v575
      %v600 = vpop.permute.xlu0 %599
      %603 = vset.pattern.permute.xlu0 0
      %604 = vperm.xlu0 %603, %v580
      %v605 = vpop.permute.xlu0 %604
      %608 = vset.pattern.permute.xlu0 0
      %609 = vperm.xlu0 %608, %v585
      %v610 = vpop.permute.xlu0 %609
      %613 = vset.pattern.permute.xlu0 0
      %614 = vperm.xlu0 %613, %v590
      %v615 = vpop.permute.xlu0 %614
      %v617 = vmul.f32 %v600, %v593
      %v618 = vmul.f32 %v605, %v594
      %v619 = vmul.f32 %v610, %v595
      %v620 = vmul.f32 %v615, %v596
      %v621 = vld [vmem:[%s1 + $0x58] sm:$0x3]
      %v622 = vld [vmem:[%s1 + $0x60] sm:$0x1]
      %v623 = vlaneseq
      %v624 = vshrl.u32 %v623, 7
      %v625 = vsub.s32 0, %v624
      %v626 = vrot.slane %v622, %v625
      %vm627 = vcmask 261120
      %v629 = vsel %vm627, %v621, 0
      %631 = vmatprep.subr.mxu0 0.0
      %632 = vmatpush1.msra.mxu0 %v617
      %633 = vmatprep.subr.mxu0 0.0
      %634 = vmatpush1.msra.mxu0 %v618
      %635 = vmatprep.subr.mxu0 0.0
      %636 = vmatpush1.msra.mxu0 %v619
      %637 = vmatprep.subr.mxu0 0.0
      %638 = vmatpush1.msra.mxu0 %v620
      %639 = vmatprep.subr.mxu0 0.0
      %640 = vmatpush1.msra.mxu0 0.0
      %641 = vmatprep.subr.mxu0 0.0
      %642 = vmatpush1.msra.mxu0 0.0
      %643 = vmatprep.subr.mxu0 0.0
      %644 = vmatpush1.msra.mxu0 0.0
      %645 = vmatprep.subr.mxu0 0.0
      %646 = vmatpush1.msra.mxu0 0.0
      %647 = vmatprep.subr.mxu0 0.0
      %648 = vmatpush1.msra.mxu0 0.0
      %649 = vmatprep.subr.mxu0 0.0
      %650 = vmatpush1.msra.mxu0 0.0
      %651 = vmatprep.subr.mxu0 0.0
      %652 = vmatpush1.msra.mxu0 0.0
      %653 = vmatprep.subr.mxu0 0.0
      %654 = vmatpush1.msra.mxu0 0.0
      %655 = vmatprep.subr.mxu0 0.0
      %656 = vmatpush1.msra.mxu0 0.0
      %657 = vmatprep.subr.mxu0 0.0
      %658 = vmatpush1.msra.mxu0 0.0
      %659 = vmatprep.subr.mxu0 0.0
      %660 = vmatpush1.msra.mxu0 0.0
      %661 = vmatprep.subr.mxu0 0.0
      %662 = vmatpush1.msra.mxu0 0.0
      %663 = vmatprep.subr.mxu0 0.0
      %664 = vmatpush1.msra.mxu0 0.0
      %665 = vmatprep.subr.mxu0 0.0
      %666 = vmatpush1.msra.mxu0 0.0
      %667 = vmatprep.subr.mxu0 0.0
      %668 = vmatpush1.msra.mxu0 0.0
      %669 = vmatprep.subr.mxu0 0.0
      %670 = vmatpush1.msra.mxu0 0.0
      %671 = vmatprep.subr.mxu0 0.0
      %672 = vmatpush1.msra.mxu0 0.0
      %673 = vmatprep.subr.mxu0 0.0
      %674 = vmatpush1.msra.mxu0 0.0
      %675 = vmatprep.subr.mxu0 0.0
      %676 = vmatpush1.msra.mxu0 0.0
      %677 = vmatprep.subr.mxu0 0.0
      %678 = vmatpush1.msra.mxu0 0.0
      %679 = vmatprep.subr.mxu0 0.0
      %680 = vmatpush1.msra.mxu0 0.0
      %681 = vmatprep.subr.mxu0 0.0
      %682 = vmatpush1.msra.mxu0 0.0
      %683 = vmatprep.subr.mxu0 0.0
      %684 = vmatpush1.msra.mxu0 0.0
      %685 = vmatprep.subr.mxu0 0.0
      %686 = vmatpush1.msra.mxu0 0.0
      %687 = vmatprep.subr.mxu0 0.0
      %688 = vmatpush1.msra.mxu0 0.0
      %689 = vmatprep.subr.mxu0 0.0
      %690 = vmatpush1.msra.mxu0 0.0
      %691 = vmatprep.subr.mxu0 0.0
      %692 = vmatpush1.msra.mxu0 0.0
      %693 = vmatprep.subr.mxu0 0.0
      %694 = vmatpush1.msra.mxu0 0.0
      %695 = vmatprep.mubr.f32.mxu0 0.0
      %696 = vmatmul.mubr.f32.gmra.mrb[0].mxu0 %v629
      %v697 = vpop.f32.mrb[0].mxu0
      %v698 = vadd.f32 %v626, %v697
      %v699 = vpop.f32.mrb[0].mxu0
      %700 = vdwg.mxu0
      %v701 = vmul.f32 %v698, 0.01
      %v702 = vmax.f32 %v698, %v701
      %v703 = vld [vmem:[%s1 + $0x68] sm:$0x1]
      %v704 = vld [vmem:[%s1 + $0x70] sm:$0x1]
      %vm705 = vcmask 254976
      %v706 = vsel %vm705, %v702, 0.0
      %v707 = vrot.slane %v706, 4
      %v708 = vadd.f32 %v706, %v707
      %v709 = vrot.slane %v708, 2
      %v710 = vadd.f32 %v708, %v709
      %v711 = vrot.slane %v710, 1
      %v712 = vadd.f32 %v710, %v711
      %v713 = vrcp.pop 2.0
      %v714 = vmul.f32 %v712, %v713
      %v715 = vsub.f32 %v702, %v714
      %v716 = vmul.f32 %v715, %v715
      %v717 = vsel %vm705, %v716, 0.0
      %v718 = vrot.slane %v717, 4
      %v719 = vadd.f32 %v717, %v718
      %v720 = vrot.slane %v719, 2
      %v721 = vadd.f32 %v719, %v720
      %v722 = vrot.slane %v721, 1
      %v723 = vadd.f32 %v721, %v722
      %v724 = vmul.f32 %v723, %v713
      %v725 = vadd.f32 %v724, 1e-05
      %v726 = vrsqrt.pop %v725
      %v727 = vmul.f32 %v715, %v726
      %v728 = vlaneseq
      %v729 = vshrl.u32 %v728, 7
      %v730 = vsub.s32 0, %v729
      %v731 = vrot.slane %v703, %v730
      %v732 = vmul.f32 %v727, %v731
      %v733 = vlaneseq
      %v734 = vshrl.u32 %v733, 7
      %v735 = vsub.s32 0, %v734
      %v736 = vrot.slane %v704, %v735
      %v737 = vadd.f32 %v732, %v736
      %v738 = vld [vmem:[%s1 + $0x78] sm:$0xff]
      %v739 = vld [vmem:[%s1 + $0x80] sm:$0xff]
      %v740 = vld [vmem:[%s1 + $0x88] sm:$0xff]
      %v741 = vld [vmem:[%s1 + $0x90] sm:$0xff]
      %v742 = vld [vmem:[%s1 + $0x98] sm:$0x1]
      %v743 = vlaneseq
      %v744 = vshrl.u32 %v743, 7
      %v745 = vsub.s32 0, %v744
      %v746 = vrot.slane %v742, %v745
      %v748 = vsel %vm627, %v737, 0
      %750 = vmatprep.subr.mxu0 0.0
      %751 = vmatpush1.msra.mxu0 %v738
      %752 = vmatprep.subr.mxu0 0.0
      %753 = vmatpush1.msra.mxu0 %v739
      %754 = vmatprep.subr.mxu0 0.0
      %755 = vmatpush1.msra.mxu0 %v740
      %756 = vmatprep.subr.mxu0 0.0
      %757 = vmatpush1.msra.mxu0 %v741
      %758 = vmatprep.subr.mxu0 0.0
      %759 = vmatpush1.msra.mxu0 0.0
      %760 = vmatprep.subr.mxu0 0.0
      %761 = vmatpush1.msra.mxu0 0.0
      %762 = vmatprep.subr.mxu0 0.0
      %763 = vmatpush1.msra.mxu0 0.0
      %764 = vmatprep.subr.mxu0 0.0
      %765 = vmatpush1.msra.mxu0 0.0
      %766 = vmatprep.subr.mxu0 0.0
      %767 = vmatpush1.msra.mxu0 0.0
      %768 = vmatprep.subr.mxu0 0.0
      %769 = vmatpush1.msra.mxu0 0.0
      %770 = vmatprep.subr.mxu0 0.0
      %771 = vmatpush1.msra.mxu0 0.0
      %772 = vmatprep.subr.mxu0 0.0
      %773 = vmatpush1.msra.mxu0 0.0
      %774 = vmatprep.subr.mxu0 0.0
      %775 = vmatpush1.msra.mxu0 0.0
      %776 = vmatprep.subr.mxu0 0.0
      %777 = vmatpush1.msra.mxu0 0.0
      %778 = vmatprep.subr.mxu0 0.0
      %779 = vmatpush1.msra.mxu0 0.0
      %780 = vmatprep.subr.mxu0 0.0
      %781 = vmatpush1.msra.mxu0 0.0
      %782 = vmatprep.subr.mxu0 0.0
      %783 = vmatpush1.msra.mxu0 0.0
      %784 = vmatprep.subr.mxu0 0.0
      %785 = vmatpush1.msra.mxu0 0.0
      %786 = vmatprep.subr.mxu0 0.0
      %787 = vmatpush1.msra.mxu0 0.0
      %788 = vmatprep.subr.mxu0 0.0
      %789 = vmatpush1.msra.mxu0 0.0
      %790 = vmatprep.subr.mxu0 0.0
      %791 = vmatpush1.msra.mxu0 0.0
      %792 = vmatprep.subr.mxu0 0.0
      %793 = vmatpush1.msra.mxu0 0.0
      %794 = vmatprep.subr.mxu0 0.0
      %795 = vmatpush1.msra.mxu0 0.0
      %796 = vmatprep.subr.mxu0 0.0
      %797 = vmatpush1.msra.mxu0 0.0
      %798 = vmatprep.subr.mxu0 0.0
      %799 = vmatpush1.msra.mxu0 0.0
      %800 = vmatprep.subr.mxu0 0.0
      %801 = vmatpush1.msra.mxu0 0.0
      %802 = vmatprep.subr.mxu0 0.0
      %803 = vmatpush1.msra.mxu0 0.0
      %804 = vmatprep.subr.mxu0 0.0
      %805 = vmatpush1.msra.mxu0 0.0
      %806 = vmatprep.subr.mxu0 0.0
      %807 = vmatpush1.msra.mxu0 0.0
      %808 = vmatprep.subr.mxu0 0.0
      %809 = vmatpush1.msra.mxu0 0.0
      %810 = vmatprep.subr.mxu0 0.0
      %811 = vmatpush1.msra.mxu0 0.0
      %812 = vmatprep.subr.mxu0 0.0
      %813 = vmatpush1.msra.mxu0 0.0
      %814 = vmatprep.mubr.f32.mxu0 0.0
      %815 = vmatmul.mubr.f32.gmra.mrb[0].mxu0 %v748
      %v816 = vpop.f32.mrb[0].mxu0
      %v817 = vadd.f32 %v746, %v816
      %v818 = vpop.f32.mrb[0].mxu0
      %819 = vdwg.mxu0
      %v820 = vmul.f32 %v817, 0.01
      %v821 = vmax.f32 %v817, %v820
      %v822 = vld [vmem:[%s1 + $0xa0] sm:$0x1]
      %v823 = vld [vmem:[%s1 + $0xa8] sm:$0x1]
      %vm824 = vcmask 123904
      %v825 = vsel %vm824, %v821, 0.0
      %v826 = vrot.slane %v825, 4
      %v827 = vadd.f32 %v825, %v826
      %v828 = vrot.slane %v827, 2
      %v829 = vadd.f32 %v827, %v828
      %v830 = vrot.slane %v829, 1
      %v831 = vadd.f32 %v829, %v830
      %v832 = vmul.f32 %v831, %v713
      %v833 = vsub.f32 %v821, %v832
      %v834 = vmul.f32 %v833, %v833
      %v835 = vsel %vm824, %v834, 0.0
      %v836 = vrot.slane %v835, 4
      %v837 = vadd.f32 %v835, %v836
      %v838 = vrot.slane %v837, 2
      %v839 = vadd.f32 %v837, %v838
      %v840 = vrot.slane %v839, 1
      %v841 = vadd.f32 %v839, %v840
      %v842 = vmul.f32 %v841, %v713
      %v843 = vadd.f32 %v842, 1e-05
      %v844 = vrsqrt.pop %v843
      %v845 = vmul.f32 %v833, %v844
      %v846 = vlaneseq
      %v847 = vshrl.u32 %v846, 7
      %v848 = vsub.s32 0, %v847
      %v849 = vrot.slane %v822, %v848
      %v850 = vmul.f32 %v845, %v849
      %v851 = vlaneseq
      %v852 = vshrl.u32 %v851, 7
      %v853 = vsub.s32 0, %v852
      %v854 = vrot.slane %v823, %v853
      %v855 = vadd.f32 %v850, %v854
      %v856 = vld [vmem:[%s1 + $0xb0] sm:$0x1]
      %s857 = sld [smem:[#allocation2]]
      %v858 = vstv %s857
      %vm859 = vcmask 130048
      %v861 = vsel %vm859, %v856, 0
      %v864 = vsel %vm859, %v855, 0
      %866 = vmatprep.subr.mxu0 0.0
      %867 = vmatpush1.xpose.msra.mxu0 %v864
      %868 = vmatprep.subr.mxu0 0.0
      %869 = vmatpush1.xpose.msra.mxu0 0.0
      %870 = vmatprep.subr.mxu0 0.0
      %871 = vmatpush1.xpose.msra.mxu0 0.0
      %872 = vmatprep.subr.mxu0 0.0
      %873 = vmatpush1.xpose.msra.mxu0 0.0
      %874 = vmatprep.subr.mxu0 0.0
      %875 = vmatpush1.xpose.msra.mxu0 0.0
      %876 = vmatprep.subr.mxu0 0.0
      %877 = vmatpush1.xpose.msra.mxu0 0.0
      %878 = vmatprep.subr.mxu0 0.0
      %879 = vmatpush1.xpose.msra.mxu0 0.0
      %880 = vmatprep.subr.mxu0 0.0
      %881 = vmatpush1.xpose.msra.mxu0 0.0
      %882 = vmatprep.subr.mxu0 0.0
      %883 = vmatpush1.xpose.msra.mxu0 0.0
      %884 = vmatprep.subr.mxu0 0.0
      %885 = vmatpush1.xpose.msra.mxu0 0.0
      %886 = vmatprep.subr.mxu0 0.0
      %887 = vmatpush1.xpose.msra.mxu0 0.0
      %888 = vmatprep.subr.mxu0 0.0
      %889 = vmatpush1.xpose.msra.mxu0 0.0
      %890 = vmatprep.subr.mxu0 0.0
      %891 = vmatpush1.xpose.msra.mxu0 0.0
      %892 = vmatprep.subr.mxu0 0.0
      %893 = vmatpush1.xpose.msra.mxu0 0.0
      %894 = vmatprep.subr.mxu0 0.0
      %895 = vmatpush1.xpose.msra.mxu0 0.0
      %896 = vmatprep.subr.mxu0 0.0
      %897 = vmatpush1.xpose.msra.mxu0 0.0
      %898 = vmatprep.subr.mxu0 0.0
      %899 = vmatpush1.xpose.msra.mxu0 0.0
      %900 = vmatprep.subr.mxu0 0.0
      %901 = vmatpush1.xpose.msra.mxu0 0.0
      %902 = vmatprep.subr.mxu0 0.0
      %903 = vmatpush1.xpose.msra.mxu0 0.0
      %904 = vmatprep.subr.mxu0 0.0
      %905 = vmatpush1.xpose.msra.mxu0 0.0
      %906 = vmatprep.subr.mxu0 0.0
      %907 = vmatpush1.xpose.msra.mxu0 0.0
      %908 = vmatprep.subr.mxu0 0.0
      %909 = vmatpush1.xpose.msra.mxu0 0.0
      %910 = vmatprep.subr.mxu0 0.0
      %911 = vmatpush1.xpose.msra.mxu0 0.0
      %912 = vmatprep.subr.mxu0 0.0
      %913 = vmatpush1.xpose.msra.mxu0 0.0
      %914 = vmatprep.subr.mxu0 0.0
      %915 = vmatpush1.xpose.msra.mxu0 0.0
      %916 = vmatprep.subr.mxu0 0.0
      %917 = vmatpush1.xpose.msra.mxu0 0.0
      %918 = vmatprep.subr.mxu0 0.0
      %919 = vmatpush1.xpose.msra.mxu0 0.0
      %920 = vmatprep.subr.mxu0 0.0
      %921 = vmatpush1.xpose.msra.mxu0 0.0
      %922 = vmatprep.subr.mxu0 0.0
      %923 = vmatpush1.xpose.msra.mxu0 0.0
      %924 = vmatprep.subr.mxu0 0.0
      %925 = vmatpush1.xpose.msra.mxu0 0.0
      %926 = vmatprep.subr.mxu0 0.0
      %927 = vmatpush1.xpose.msra.mxu0 0.0
      %928 = vmatprep.subr.mxu0 0.0
      %929 = vmatpush1.xpose.msra.mxu0 0.0
      %930 = vmatprep.mubr.f32.mxu0 0.0
      %931 = vmatmul.mubr.f32.gmra.mrb[0].mxu0 %v861
      %v932 = vpop.f32.mrb[0].mxu0
      %v933 = vadd.f32 %v858, %v932
      %v934 = vpop.f32.mrb[0].mxu0
      %935 = vdwg.mxu0
      %vm936 = vcmask 8192
      %937 = vst.msk [vmem:[%s167] sm:$0x1] %vm936, %v933
      %p938 = scmp.lt.s32.totalorder %s15, 7
      %s939 = scalar_select %p938, %s15, 7
      %s940 = scalar_lea.vmem %s3, %s939
      // Predicated region
      $region33: #{forward.1} parent=31 // pred_check
        %p941 = pneg %p101
      $region34: #{forward.1} parent=31 // pred_check_branch
        %943 = sbr.rel (%p941) target = $region36
      $region35: #{forward.1} parent=31 // pred_region
        _
      $region36: #{forward.1} parent=31 // pred_fallthru
        _
    $region32: #{forward.1} parent=5 // pred_fallthru
      _
    %p944 = scmp.le.s32.totalorder 2, %s10
    // Predicated region
    $region37: #{forward.1} parent=5 // pred_check
      %p945 = pneg %p944
    $region38: #{forward.1} parent=5 // pred_check_branch
      %947 = sbr.rel (%p945) target = $region40
    $region39: #{forward.1} parent=5 // pred_region
      %s948 = ssub.s32 %s10, 2
      // Predicated region
      $region41: #{forward.1} parent=39 // pred_check
        %p949 = pneg %p107
      $region42: #{forward.1} parent=39 // pred_check_branch
        %951 = sbr.rel (%p949) target = $region44
      $region43: #{forward.1} parent=39 // pred_region
        %p952 = scmp.lt.s32.totalorder %s16, 7
        %s953 = scalar_select %p952, %s16, 7
        %s954 = scalar_lea.vmem %s3, %s953
      $region44: #{forward.1} parent=39 // pred_fallthru
        _
    $region40: #{forward.1} parent=5 // pred_fallthru
      _
  $region6: #{forward.1} parent=0 // loop_footer
    %s14 = sadd.s32 1, %s10
  $region7: #{forward.1} parent=0 // loop_footer_branch
    %9 = sbr.rel target = $region3
  $region8: #{forward.1} parent=0 // loop_exit
    _

</llo_original>
